<compile_context>
chip_gen: v6e
topology: v6e:2x2x1
jax: 0.10.0
libtpu: 0.0.40
codegen_flags: <defaults>
</compile_context>

<pallas_src>
import jax
import jax.numpy as jnp
from jax.experimental import pallas as pl
from jax.experimental.pallas import tpu as pltpu

IN_F = 2
HID_F = 5
OUT_F = 1

# Flat parameter layout (f32, stored in SMEM):
W1_OFF = 0                        # w1[i, j] at W1_OFF + i*HID_F + j   (10 values)
B1_OFF = IN_F * HID_F             # b1[j]    at B1_OFF + j             (5 values)
W2_OFF = B1_OFF + HID_F           # w2[j, 0] at W2_OFF + j             (5 values)
B2_OFF = W2_OFF + HID_F * OUT_F   # b2[0]    at B2_OFF                 (1 value)
N_PARAMS = B2_OFF + OUT_F         # 21

MAX_TILE_B = 8192  # batch rows (lanes) per grid step for large batches


def mlp_kernel(params_ref, xT_ref, o_ref):
    # params_ref: SMEM (N_PARAMS,) f32
    # xT_ref:     VMEM (IN_F, TILE_B)  -- batch on the lane axis
    # o_ref:      VMEM (OUT_F, TILE_B) -- lane-dense output, unmasked store
    x_all = xT_ref[...]                                  # (IN_F, TILE_B)
    xs = [x_all[i:i + 1, :] for i in range(IN_F)]        # each (1, TILE_B)

    y = jnp.zeros_like(xs[0]) + params_ref[B2_OFF]       # broadcast b2
    for j in range(HID_F):                               # unrolled VPU fmas
        h = jnp.zeros_like(xs[0]) + params_ref[B1_OFF + j]
        for i in range(IN_F):
            h = h + xs[i] * params_ref[W1_OFF + i * HID_F + j]
        h = jnp.maximum(h, 0.0)                          # ReLU
        y = y + h * params_ref[W2_OFF + j]

    o_ref[...] = y.astype(o_ref.dtype)


def neural_network_forward(x, w1, b1, w2, b2, *, max_tile_b=MAX_TILE_B):
    """x: (B, IN_F) f32; w1: (IN_F, HID_F); b1: (HID_F,); w2: (HID_F, OUT_F);
    b2: (OUT_F,).  Returns (B, OUT_F) f32 == relu(x @ w1 + b1) @ w2 + b2."""
    B = x.shape[0]

    params = jnp.concatenate(
        [w1.reshape(-1), b1.reshape(-1), w2.reshape(-1), b2.reshape(-1)]
    ).astype(jnp.float32)
    assert params.shape[0] == N_PARAMS

    # Batch-on-lanes layout: x^T is (IN_F, B); pad the lane (batch) axis to a
    # multiple of the tile (itself a multiple of 128) so loads/stores are
    # unmasked and every grid step sees a full tile.
    b_lane = 128 * pl.cdiv(B, 128)
    tile_b = min(max_tile_b, b_lane)
    b_pad = tile_b * pl.cdiv(B, tile_b)
    xT = jnp.pad(x.astype(jnp.float32).T, ((0, 0), (0, b_pad - B)))

    out_t = pl.pallas_call(
        mlp_kernel,
        out_shape=jax.ShapeDtypeStruct((OUT_F, b_pad), jnp.float32),
        grid=(b_pad // tile_b,),
        in_specs=[
            pl.BlockSpec(memory_space=pltpu.MemorySpace.SMEM),   # 21 scalars
            pl.BlockSpec((IN_F, tile_b), lambda i: (0, i)),      # x^T lane tile
        ],
        out_specs=pl.BlockSpec((OUT_F, tile_b), lambda i: (0, i)),
        compiler_params=pltpu.CompilerParams(
            dimension_semantics=("parallel",),
        ),
    )(params, xT)

    return out_t[:, :B].T  # back to (B, OUT_F)


def init_params(key):
    # Deterministic init mimicking torch.nn.Linear's U(-1/sqrt(fan_in), ...).
    k1, k2, k3, k4 = jax.random.split(key, 4)
    bound1 = 1.0 / jnp.sqrt(IN_F)
    bound2 = 1.0 / jnp.sqrt(HID_F)
    w1 = jax.random.uniform(k1, (IN_F, HID_F), jnp.float32, -bound1, bound1)
    b1 = jax.random.uniform(k2, (HID_F,), jnp.float32, -bound1, bound1)
    w2 = jax.random.uniform(k3, (HID_F, OUT_F), jnp.float32, -bound2, bound2)
    b2 = jax.random.uniform(k4, (OUT_F,), jnp.float32, -bound2, bound2)
    return w1, b1, w2, b2


if __name__ == "__main__":
    key = jax.random.PRNGKey(0)
    kx, kp = jax.random.split(key)

    # Mirrors the dataset construction: integers in [-10, 10) divided by 10.
    B = 16
    x = jax.random.randint(kx, (B, IN_F), -10, 10).astype(jnp.float32) / 10.0
    w1, b1, w2, b2 = init_params(kp)

    out = jax.block_until_ready(neural_network_forward(x, w1, b1, w2, b2))
    ref = jnp.maximum(x @ w1 + b1, 0.0) @ w2 + b2
    assert out.shape == (B, OUT_F)
    assert jnp.allclose(out, ref, atol=1e-5, rtol=1e-5)

    # Also exercise the padded, multi-step-grid path (non-multiple-of-128 batch).
    B2 = 300
    x2 = jax.random.randint(jax.random.PRNGKey(1), (B2, IN_F), -10, 10)
    x2 = x2.astype(jnp.float32) / 10.0
    out2 = jax.block_until_ready(
        neural_network_forward(x2, w1, b1, w2, b2, max_tile_b=128))
    ref2 = jnp.maximum(x2 @ w1 + b1, 0.0) @ w2 + b2
    assert out2.shape == (B2, OUT_F)
    assert jnp.allclose(out2, ref2, atol=1e-5, rtol=1e-5)

    print("KERNEL_OK")
</pallas_src>

<mosaic_0001>
module attributes {stable_mosaic.version = 11 : i64} {
  func.func @mlp_kernel(%arg0: i32, %arg1: memref<21xf32, #tpu.memory_space<smem>>, %arg2: memref<2x128xf32, #tpu.memory_space<vmem>>, %arg3: memref<1x128xf32, #tpu.memory_space<vmem>>) attributes {dimension_semantics = [#tpu.dimension_semantics<parallel>], iteration_bounds = array<i64: 1>, scalar_prefetch = 0 : i64, scratch_operands = 0 : i64, tpu.core_type = #tpu.core_type<tc>, window_params = [{transform_indices = @transform_0, window_bounds = array<i64: 21>}, {transform_indices = @transform_1, window_bounds = array<i64: 2, 128>}, {transform_indices = @transform_2, window_bounds = array<i64: 1, 128>}]} {
    %c0 = arith.constant 0 : index
    %c0_0 = arith.constant 0 : index
    %0 = vector.load %arg2[%c0, %c0_0] : memref<2x128xf32, #tpu.memory_space<vmem>>, vector<2x128xf32>
    %1 = vector.extract_strided_slice %0 {offsets = [0, 0], sizes = [1, 128], strides = [1, 1]} : vector<2x128xf32> to vector<1x128xf32>
    %2 = vector.extract_strided_slice %0 {offsets = [1, 0], sizes = [1, 128], strides = [1, 1]} : vector<2x128xf32> to vector<1x128xf32>
    %cst = arith.constant 0.000000e+00 : f32
    %3 = vector.broadcast %cst : f32 to vector<1x128xf32>
    %c20 = arith.constant 20 : index
    %4 = memref.load %arg1[%c20] : memref<21xf32, #tpu.memory_space<smem>>
    %5 = vector.broadcast %4 : f32 to vector<1x128xf32>
    %6 = arith.addf %3, %5 : vector<1x128xf32>
    %cst_1 = arith.constant 0.000000e+00 : f32
    %7 = vector.broadcast %cst_1 : f32 to vector<1x128xf32>
    %c10 = arith.constant 10 : index
    %8 = memref.load %arg1[%c10] : memref<21xf32, #tpu.memory_space<smem>>
    %9 = vector.broadcast %8 : f32 to vector<1x128xf32>
    %10 = arith.addf %7, %9 : vector<1x128xf32>
    %c0_2 = arith.constant 0 : index
    %11 = memref.load %arg1[%c0_2] : memref<21xf32, #tpu.memory_space<smem>>
    %12 = vector.broadcast %11 : f32 to vector<1x128xf32>
    %13 = arith.mulf %1, %12 : vector<1x128xf32>
    %14 = arith.addf %10, %13 : vector<1x128xf32>
    %c5 = arith.constant 5 : index
    %15 = memref.load %arg1[%c5] : memref<21xf32, #tpu.memory_space<smem>>
    %16 = vector.broadcast %15 : f32 to vector<1x128xf32>
    %17 = arith.mulf %2, %16 : vector<1x128xf32>
    %18 = arith.addf %14, %17 : vector<1x128xf32>
    %cst_3 = arith.constant 0.000000e+00 : f32
    %19 = vector.broadcast %cst_3 : f32 to vector<1x128xf32>
    %20 = arith.maximumf %18, %19 : vector<1x128xf32>
    %c15 = arith.constant 15 : index
    %21 = memref.load %arg1[%c15] : memref<21xf32, #tpu.memory_space<smem>>
    %22 = vector.broadcast %21 : f32 to vector<1x128xf32>
    %23 = arith.mulf %20, %22 : vector<1x128xf32>
    %24 = arith.addf %6, %23 : vector<1x128xf32>
    %cst_4 = arith.constant 0.000000e+00 : f32
    %25 = vector.broadcast %cst_4 : f32 to vector<1x128xf32>
    %c11 = arith.constant 11 : index
    %26 = memref.load %arg1[%c11] : memref<21xf32, #tpu.memory_space<smem>>
    %27 = vector.broadcast %26 : f32 to vector<1x128xf32>
    %28 = arith.addf %25, %27 : vector<1x128xf32>
    %c1 = arith.constant 1 : index
    %29 = memref.load %arg1[%c1] : memref<21xf32, #tpu.memory_space<smem>>
    %30 = vector.broadcast %29 : f32 to vector<1x128xf32>
    %31 = arith.mulf %1, %30 : vector<1x128xf32>
    %32 = arith.addf %28, %31 : vector<1x128xf32>
    %c6 = arith.constant 6 : index
    %33 = memref.load %arg1[%c6] : memref<21xf32, #tpu.memory_space<smem>>
    %34 = vector.broadcast %33 : f32 to vector<1x128xf32>
    %35 = arith.mulf %2, %34 : vector<1x128xf32>
    %36 = arith.addf %32, %35 : vector<1x128xf32>
    %cst_5 = arith.constant 0.000000e+00 : f32
    %37 = vector.broadcast %cst_5 : f32 to vector<1x128xf32>
    %38 = arith.maximumf %36, %37 : vector<1x128xf32>
    %c16 = arith.constant 16 : index
    %39 = memref.load %arg1[%c16] : memref<21xf32, #tpu.memory_space<smem>>
    %40 = vector.broadcast %39 : f32 to vector<1x128xf32>
    %41 = arith.mulf %38, %40 : vector<1x128xf32>
    %42 = arith.addf %24, %41 : vector<1x128xf32>
    %cst_6 = arith.constant 0.000000e+00 : f32
    %43 = vector.broadcast %cst_6 : f32 to vector<1x128xf32>
    %c12 = arith.constant 12 : index
    %44 = memref.load %arg1[%c12] : memref<21xf32, #tpu.memory_space<smem>>
    %45 = vector.broadcast %44 : f32 to vector<1x128xf32>
    %46 = arith.addf %43, %45 : vector<1x128xf32>
    %c2 = arith.constant 2 : index
    %47 = memref.load %arg1[%c2] : memref<21xf32, #tpu.memory_space<smem>>
    %48 = vector.broadcast %47 : f32 to vector<1x128xf32>
    %49 = arith.mulf %1, %48 : vector<1x128xf32>
    %50 = arith.addf %46, %49 : vector<1x128xf32>
    %c7 = arith.constant 7 : index
    %51 = memref.load %arg1[%c7] : memref<21xf32, #tpu.memory_space<smem>>
    %52 = vector.broadcast %51 : f32 to vector<1x128xf32>
    %53 = arith.mulf %2, %52 : vector<1x128xf32>
    %54 = arith.addf %50, %53 : vector<1x128xf32>
    %cst_7 = arith.constant 0.000000e+00 : f32
    %55 = vector.broadcast %cst_7 : f32 to vector<1x128xf32>
    %56 = arith.maximumf %54, %55 : vector<1x128xf32>
    %c17 = arith.constant 17 : index
    %57 = memref.load %arg1[%c17] : memref<21xf32, #tpu.memory_space<smem>>
    %58 = vector.broadcast %57 : f32 to vector<1x128xf32>
    %59 = arith.mulf %56, %58 : vector<1x128xf32>
    %60 = arith.addf %42, %59 : vector<1x128xf32>
    %cst_8 = arith.constant 0.000000e+00 : f32
    %61 = vector.broadcast %cst_8 : f32 to vector<1x128xf32>
    %c13 = arith.constant 13 : index
    %62 = memref.load %arg1[%c13] : memref<21xf32, #tpu.memory_space<smem>>
    %63 = vector.broadcast %62 : f32 to vector<1x128xf32>
    %64 = arith.addf %61, %63 : vector<1x128xf32>
    %c3 = arith.constant 3 : index
    %65 = memref.load %arg1[%c3] : memref<21xf32, #tpu.memory_space<smem>>
    %66 = vector.broadcast %65 : f32 to vector<1x128xf32>
    %67 = arith.mulf %1, %66 : vector<1x128xf32>
    %68 = arith.addf %64, %67 : vector<1x128xf32>
    %c8 = arith.constant 8 : index
    %69 = memref.load %arg1[%c8] : memref<21xf32, #tpu.memory_space<smem>>
    %70 = vector.broadcast %69 : f32 to vector<1x128xf32>
    %71 = arith.mulf %2, %70 : vector<1x128xf32>
    %72 = arith.addf %68, %71 : vector<1x128xf32>
    %cst_9 = arith.constant 0.000000e+00 : f32
    %73 = vector.broadcast %cst_9 : f32 to vector<1x128xf32>
    %74 = arith.maximumf %72, %73 : vector<1x128xf32>
    %c18 = arith.constant 18 : index
    %75 = memref.load %arg1[%c18] : memref<21xf32, #tpu.memory_space<smem>>
    %76 = vector.broadcast %75 : f32 to vector<1x128xf32>
    %77 = arith.mulf %74, %76 : vector<1x128xf32>
    %78 = arith.addf %60, %77 : vector<1x128xf32>
    %cst_10 = arith.constant 0.000000e+00 : f32
    %79 = vector.broadcast %cst_10 : f32 to vector<1x128xf32>
    %c14 = arith.constant 14 : index
    %80 = memref.load %arg1[%c14] : memref<21xf32, #tpu.memory_space<smem>>
    %81 = vector.broadcast %80 : f32 to vector<1x128xf32>
    %82 = arith.addf %79, %81 : vector<1x128xf32>
    %c4 = arith.constant 4 : index
    %83 = memref.load %arg1[%c4] : memref<21xf32, #tpu.memory_space<smem>>
    %84 = vector.broadcast %83 : f32 to vector<1x128xf32>
    %85 = arith.mulf %1, %84 : vector<1x128xf32>
    %86 = arith.addf %82, %85 : vector<1x128xf32>
    %c9 = arith.constant 9 : index
    %87 = memref.load %arg1[%c9] : memref<21xf32, #tpu.memory_space<smem>>
    %88 = vector.broadcast %87 : f32 to vector<1x128xf32>
    %89 = arith.mulf %2, %88 : vector<1x128xf32>
    %90 = arith.addf %86, %89 : vector<1x128xf32>
    %cst_11 = arith.constant 0.000000e+00 : f32
    %91 = vector.broadcast %cst_11 : f32 to vector<1x128xf32>
    %92 = arith.maximumf %90, %91 : vector<1x128xf32>
    %c19 = arith.constant 19 : index
    %93 = memref.load %arg1[%c19] : memref<21xf32, #tpu.memory_space<smem>>
    %94 = vector.broadcast %93 : f32 to vector<1x128xf32>
    %95 = arith.mulf %92, %94 : vector<1x128xf32>
    %96 = arith.addf %78, %95 : vector<1x128xf32>
    %c0_12 = arith.constant 0 : index
    %c0_13 = arith.constant 0 : index
    %97 = vector.load %arg3[%c0_12, %c0_13] : memref<1x128xf32, #tpu.memory_space<vmem>>, vector<1x128xf32>
    tpu.vector_store %arg3[%c0_12, %c0_13], %96 {strides = array<i32>} : memref<1x128xf32, #tpu.memory_space<vmem>>, vector<1x128xf32>,
    return
  }
  func.func @transform_0(%arg0: i32) -> i32 {
    %c0_i32 = arith.constant 0 : i32
    %c0_i32_0 = arith.constant 0 : i32
    return %c0_i32 : i32
  }
  func.func @transform_1(%arg0: i32) -> (i32, i32) {
    %c0_i32 = arith.constant 0 : i32
    %c0_i32_0 = arith.constant 0 : i32
    return %c0_i32, %arg0 : i32, i32
  }
  func.func @transform_2(%arg0: i32) -> (i32, i32) {
    %c0_i32 = arith.constant 0 : i32
    %c0_i32_0 = arith.constant 0 : i32
    return %c0_i32, %arg0 : i32, i32
  }
}

</mosaic_0001>

<llo_original>
// kernel: tpu_custom_call.1
$region0: #{tpu_custom_call.1}
  #allocation0 [shape = 'u32[]', space=smem, size = 0x4, offset = 0x4, fixed_abs, tag = 'smem constant byte address 0x4 - core index']
  #allocation1 [shape = 'u32[144,128]{1,0:T(1,128)}', space=vmem, size = 0x12000, scoped, tag = 'internal scratch']
  %s0 = inlined_call_operand.hbm [shape: f32[21], index: 0, kind: input, shape index: {}]
  %s1 = inlined_call_operand.hbm [shape: f32[2,128], index: 1, kind: input, shape index: {}]
  %s2 = inlined_call_operand.hbm [shape: f32[1,128], index: 2, kind: output, shape index: {}]
  %s3 = sld [smem:[#allocation0]]
  $region26: #{tpu_custom_call.1} parent=0
    _
  %s5 = ssub.s32 1, %s3
  %s6 = scalar_select 0, %s5, %s3
  $region1: #{tpu_custom_call.1} parent=0
    #allocation2 [shape = 'u8[512]{0}', space=smem, size = 0x200, scoped, tag = 'input window, operand 0, single buffered']
    #allocation3 [shape = 's32[1]{0}', space=sflag, size = 0x4, scoped, tag = 'scoped memory for tpu_custom_call.1']
    #allocation4 [shape = 's32[1]{0}', space=sflag, size = 0x4, scoped, tag = 'scoped memory for tpu_custom_call.1']
    #allocation5 [shape = 's32[1]{0}', space=sflag, size = 0x4, scoped, tag = 'scoped memory for tpu_custom_call.1']
    #allocation6 [shape = 'u8[1024]{0}', space=vmem, size = 0x400, scoped, tag = 'input window, operand 1, single buffered']
    #allocation7 [shape = 'u8[512]{0}', space=vmem, size = 0x400, scoped, tag = 'output window, operand 0, single buffered']
    %7 = vsyncpa [#allocation5], 0
    %8 = vsyncpa [#allocation3], 0
    %9 = vsyncpa [#allocation4], 0
    // Predicated region
    $region2: #{tpu_custom_call.1} parent=1 // pred_check
      _
    $region3: #{tpu_custom_call.1} parent=1 // pred_check_branch
      %11 = sbr.rel (0) target = $region5
    $region4: #{tpu_custom_call.1} parent=1 // pred_region
      %s13 = ssub.s32 16, 16
      %14 = vsyncadd [#allocation5], %s13
      %17 = dma.hbm_to_smem %s0, 16, [#allocation2], [#allocation5]
    $region5: #{tpu_custom_call.1} parent=1 // pred_fallthru
      _
    // Predicated region
    $region6: #{tpu_custom_call.1} parent=1 // pred_check
      _
    $region7: #{tpu_custom_call.1} parent=1 // pred_check_branch
      %19 = sbr.rel (0) target = $region9
    $region8: #{tpu_custom_call.1} parent=1 // pred_region
      %s21 = ssub.s32 32, 32
      %22 = vsyncadd [#allocation3], %s21
      %s24 = sshll.u32 [#allocation6], 4
      %s25 = int_to_ptr.vmem [resolvable:$true] %s24
      %27 = dma.hbm_to_vmem [thread:$0]  %s1, 32, %s25, [#allocation3]
    $region9: #{tpu_custom_call.1} parent=1 // pred_fallthru
      _
    // Predicated region
    $region10: #{tpu_custom_call.1} parent=1 // pred_check
      _
    $region11: #{tpu_custom_call.1} parent=1 // pred_check_branch
      %29 = sbr.rel (0) target = $region13
    $region12: #{tpu_custom_call.1} parent=1 // pred_region
      %30 = dma.done [#allocation5], 16
    $region13: #{tpu_custom_call.1} parent=1 // pred_fallthru
      _
    // Predicated region
    $region14: #{tpu_custom_call.1} parent=1 // pred_check
      _
    $region15: #{tpu_custom_call.1} parent=1 // pred_check_branch
      %32 = sbr.rel (0) target = $region17
    $region16: #{tpu_custom_call.1} parent=1 // pred_region
      %33 = dma.done [#allocation3], 32
    $region17: #{tpu_custom_call.1} parent=1 // pred_fallthru
      _
    %34 = sfence
    %v35 = vld [vmem:[#allocation6] sm:$0x3]
    %s36 = sld [smem:[#allocation2 + $0x14]]
    %v37 = vstv %s36
    %v38 = vadd.f32 %v37, 0.0
    %s39 = sld [smem:[#allocation2 + $0xa]]
    %v40 = vstv %s39
    %v41 = vadd.f32 %v40, 0.0
    %s42 = sld [smem:[#allocation2]]
    %v43 = vstv %s42
    %v44 = vmul.f32 %v35, %v43
    %v45 = vadd.f32 %v41, %v44
    %s46 = sld [smem:[#allocation2 + $0x5]]
    %v47 = vstv %s46
    %v48 = vmul.f32 %v35, %v47
    %v50 = vrot.slane %v48, 1
    %v52 = vadd.f32 %v45, %v50
    %v53 = vmax.f32 %v52, 0.0
    %s54 = sld [smem:[#allocation2 + $0xf]]
    %v55 = vstv %s54
    %v56 = vmul.f32 %v53, %v55
    %v57 = vadd.f32 %v38, %v56
    %s58 = sld [smem:[#allocation2 + $0xb]]
    %v59 = vstv %s58
    %v60 = vadd.f32 %v59, 0.0
    %s61 = sld [smem:[#allocation2 + $0x1]]
    %v62 = vstv %s61
    %v63 = vmul.f32 %v35, %v62
    %v64 = vadd.f32 %v60, %v63
    %s65 = sld [smem:[#allocation2 + $0x6]]
    %v66 = vstv %s65
    %v67 = vmul.f32 %v35, %v66
    %v69 = vrot.slane %v67, 1
    %v71 = vadd.f32 %v64, %v69
    %v72 = vmax.f32 %v71, 0.0
    %s73 = sld [smem:[#allocation2 + $0x10]]
    %v74 = vstv %s73
    %v75 = vmul.f32 %v72, %v74
    %v76 = vadd.f32 %v57, %v75
    %s77 = sld [smem:[#allocation2 + $0xc]]
    %v78 = vstv %s77
    %v79 = vadd.f32 %v78, 0.0
    %s80 = sld [smem:[#allocation2 + $0x2]]
    %v81 = vstv %s80
    %v82 = vmul.f32 %v35, %v81
    %v83 = vadd.f32 %v79, %v82
    %s84 = sld [smem:[#allocation2 + $0x7]]
    %v85 = vstv %s84
    %v86 = vmul.f32 %v35, %v85
    %v88 = vrot.slane %v86, 1
    %v90 = vadd.f32 %v83, %v88
    %v91 = vmax.f32 %v90, 0.0
    %s92 = sld [smem:[#allocation2 + $0x11]]
    %v93 = vstv %s92
    %v94 = vmul.f32 %v91, %v93
    %v95 = vadd.f32 %v76, %v94
    %s96 = sld [smem:[#allocation2 + $0xd]]
    %v97 = vstv %s96
    %v98 = vadd.f32 %v97, 0.0
    %s99 = sld [smem:[#allocation2 + $0x3]]
    %v100 = vstv %s99
    %v101 = vmul.f32 %v35, %v100
    %v102 = vadd.f32 %v98, %v101
    %s103 = sld [smem:[#allocation2 + $0x8]]
    %v104 = vstv %s103
    %v105 = vmul.f32 %v35, %v104
    %v107 = vrot.slane %v105, 1
    %v109 = vadd.f32 %v102, %v107
    %v110 = vmax.f32 %v109, 0.0
    %s111 = sld [smem:[#allocation2 + $0x12]]
    %v112 = vstv %s111
    %v113 = vmul.f32 %v110, %v112
    %v114 = vadd.f32 %v95, %v113
    %s115 = sld [smem:[#allocation2 + $0xe]]
    %v116 = vstv %s115
    %v117 = vadd.f32 %v116, 0.0
    %s118 = sld [smem:[#allocation2 + $0x4]]
    %v119 = vstv %s118
    %v120 = vmul.f32 %v35, %v119
    %v121 = vadd.f32 %v117, %v120
    %s122 = sld [smem:[#allocation2 + $0x9]]
    %v123 = vstv %s122
    %v124 = vmul.f32 %v35, %v123
    %v126 = vrot.slane %v124, 1
    %v128 = vadd.f32 %v121, %v126
    %v129 = vmax.f32 %v128, 0.0
    %s130 = sld [smem:[#allocation2 + $0x13]]
    %v131 = vstv %s130
    %v132 = vmul.f32 %v129, %v131
    %v133 = vadd.f32 %v114, %v132
    %134 = vst [vmem:[#allocation7] sm:$0x1] %v133
    // Predicated region
    $region18: #{tpu_custom_call.1} parent=1 // pred_check
      _
    $region19: #{tpu_custom_call.1} parent=1 // pred_check_branch
      %136 = sbr.rel (0) target = $region21
    $region20: #{tpu_custom_call.1} parent=1 // pred_region
      %s138 = ssub.s32 16, 16
      %139 = vsyncadd [#allocation4], %s138
      %s141 = sshll.u32 [#allocation7], 4
      %s142 = int_to_ptr.vmem [resolvable:$true] %s141
      %144 = dma.vmem_to_hbm [thread:$0]  %s142, 16, %s2, [#allocation4]
    $region21: #{tpu_custom_call.1} parent=1 // pred_fallthru
      _
    // Predicated region
    $region22: #{tpu_custom_call.1} parent=1 // pred_check
      _
    $region23: #{tpu_custom_call.1} parent=1 // pred_check_branch
      %146 = sbr.rel (0) target = $region25
    $region24: #{tpu_custom_call.1} parent=1 // pred_region
      %147 = dma.done [#allocation4], 16
    $region25: #{tpu_custom_call.1} parent=1 // pred_fallthru
      _
    %148 = vsyncpa [#allocation3], 1
    %149 = vsyncpa [#allocation4], 1
    %150 = vsyncpa [#allocation5], 1

</llo_original>
